<compile_context>
chip_gen: v7x
topology: tpu7x:2x2x1
jax: 0.10.0
libtpu: 0.0.40
codegen_flags: <defaults>
</compile_context>

<pallas_src>
import math

import jax
import jax.numpy as jnp
from jax.experimental import pallas as pl
from jax.experimental.pallas import tpu as pltpu  # noqa: F401  (TPU backend)


# ------------------------------ Pallas kernel --------------------------------
def _normal_dist_decoder_kernel(x_ref, wmu_ref, bmu_ref, wlv_ref, blv_ref,
                                mu_ref, scale_ref):
    """mu = X @ Wmu + bmu ;  scale = softplus(X @ Wlv + blv).  One fused block."""
    x = x_ref[...]                                                  # (B, F) f32
    mu = jnp.dot(x, wmu_ref[...], preferred_element_type=jnp.float32) + bmu_ref[...]
    pre = jnp.dot(x, wlv_ref[...], preferred_element_type=jnp.float32) + blv_ref[...]
    mu_ref[...] = mu
    scale_ref[...] = jax.nn.softplus(pre)                           # EUP epilogue


def normal_dist_decoder(params, xout):
    """Returns (mu, scale) of Normal(mu, softplus(logvar(x))).  One pallas_call."""
    x = jnp.squeeze(xout)                       # mirrors Xout.squeeze()
    if x.ndim == 1:                             # keep an explicit batch dim
        x = x[None, :]
    x = x.astype(jnp.float32)
    B, F = x.shape
    L = params["w_mu"].shape[1]

    def spec_full(shape):
        return pl.BlockSpec(shape, lambda i: (0, 0))

    mu, scale = pl.pallas_call(
        _normal_dist_decoder_kernel,
        grid=(1,),
        out_shape=(jax.ShapeDtypeStruct((B, L), jnp.float32),
                   jax.ShapeDtypeStruct((B, L), jnp.float32)),
        in_specs=[spec_full((B, F)),            # activations
                  spec_full((F, L)), spec_full((1, L)),   # mu head (pre-transposed)
                  spec_full((F, L)), spec_full((1, L))],  # logvar head
        out_specs=(spec_full((B, L)), spec_full((B, L))),
    )(x, params["w_mu"], params["b_mu"], params["w_lv"], params["b_lv"])
    return mu, scale


# ------------------------- deterministic parameters ---------------------------
def build_params(num_feat_in, latentd, seed=1):
    """kaiming_uniform_ weights (a=0, fan_in) and U(0,1) biases, like the module.

    Weights are stored already transposed to (num_feat_in, latentd) so the
    kernel consumes them directly as the (K, N) matmul operand.
    """
    k = jax.random.split(jax.random.PRNGKey(seed), 4)
    bound = math.sqrt(6.0 / num_feat_in)        # kaiming_uniform_ bound
    w_mu = jax.random.uniform(k[0], (num_feat_in, latentd), jnp.float32, -bound, bound)
    w_lv = jax.random.uniform(k[1], (num_feat_in, latentd), jnp.float32, -bound, bound)
    b_mu = jax.random.uniform(k[2], (1, latentd), jnp.float32, 0.0, 1.0)
    b_lv = jax.random.uniform(k[3], (1, latentd), jnp.float32, 0.0, 1.0)
    return {"w_mu": w_mu, "b_mu": b_mu, "w_lv": w_lv, "b_lv": b_lv}


# ----------------------------------- main -------------------------------------
if __name__ == "__main__":
    NUM_FEAT_IN = 512
    LATENT = 16
    BATCH = 2

    params = build_params(NUM_FEAT_IN, LATENT, seed=1)

    # trailing singleton dim exercises the Xout.squeeze() in the forward
    xout = jax.random.normal(jax.random.PRNGKey(0),
                             (BATCH, NUM_FEAT_IN, 1), jnp.float32)

    fwd = jax.jit(normal_dist_decoder)
    mu, scale = fwd(params, xout)
    jax.block_until_ready((mu, scale))

    # pure-JAX reference check
    x_ref = jnp.squeeze(xout)
    mu_ref = x_ref @ params["w_mu"] + params["b_mu"][0]
    scale_ref = jax.nn.softplus(x_ref @ params["w_lv"] + params["b_lv"][0])

    assert mu.shape == (BATCH, LATENT) and scale.shape == (BATCH, LATENT)
    assert jnp.allclose(mu, mu_ref, rtol=1e-4, atol=1e-4)
    assert jnp.allclose(scale, scale_ref, rtol=1e-4, atol=1e-4)
    assert bool(jnp.all(scale > 0))             # valid Normal scale
    print("KERNEL_OK")
</pallas_src>

<mosaic_0001>
module attributes {stable_mosaic.version = 11 : i64} {
  func.func @_normal_dist_decoder_kernel(%arg0: i32, %arg1: memref<2x512xf32, #tpu.memory_space<vmem>>, %arg2: memref<512x16xf32, #tpu.memory_space<vmem>>, %arg3: memref<1x16xf32, #tpu.memory_space<vmem>>, %arg4: memref<512x16xf32, #tpu.memory_space<vmem>>, %arg5: memref<1x16xf32, #tpu.memory_space<vmem>>, %arg6: memref<2x16xf32, #tpu.memory_space<vmem>>, %arg7: memref<2x16xf32, #tpu.memory_space<vmem>>) attributes {dimension_semantics = [#tpu.dimension_semantics<arbitrary>], iteration_bounds = array<i64: 1>, scalar_prefetch = 0 : i64, scratch_operands = 0 : i64, tpu.core_type = #tpu.core_type<tc>, window_params = [{pipeline_mode = #tpu.pipeline_mode<synchronous>, transform_indices = @transform_0, window_bounds = array<i64: 2, 512>}, {pipeline_mode = #tpu.pipeline_mode<synchronous>, transform_indices = @transform_1, window_bounds = array<i64: 512, 16>}, {pipeline_mode = #tpu.pipeline_mode<synchronous>, transform_indices = @transform_2, window_bounds = array<i64: 1, 16>}, {pipeline_mode = #tpu.pipeline_mode<synchronous>, transform_indices = @transform_3, window_bounds = array<i64: 512, 16>}, {pipeline_mode = #tpu.pipeline_mode<synchronous>, transform_indices = @transform_4, window_bounds = array<i64: 1, 16>}, {pipeline_mode = #tpu.pipeline_mode<synchronous>, transform_indices = @transform_5, window_bounds = array<i64: 2, 16>}, {pipeline_mode = #tpu.pipeline_mode<synchronous>, transform_indices = @transform_6, window_bounds = array<i64: 2, 16>}]} {
    %c0 = arith.constant 0 : index
    %c0_0 = arith.constant 0 : index
    %0 = vector.load %arg1[%c0, %c0_0] : memref<2x512xf32, #tpu.memory_space<vmem>>, vector<2x512xf32>
    %c0_1 = arith.constant 0 : index
    %c0_2 = arith.constant 0 : index
    %1 = vector.load %arg2[%c0_1, %c0_2] : memref<512x16xf32, #tpu.memory_space<vmem>>, vector<512x16xf32>
    %cst = arith.constant dense<0.000000e+00> : vector<2x16xf32>
    %2 = tpu.matmul %0, %1, %cst {dimension_numbers = #tpu.dot_dimension_numbers<[1], [0], [0], [1], [0, 0, 1, 1], [], []>} : vector<2x512xf32>, vector<512x16xf32>, vector<2x16xf32> -> vector<2x16xf32>
    %c0_3 = arith.constant 0 : index
    %c0_4 = arith.constant 0 : index
    %3 = vector.load %arg3[%c0_3, %c0_4] : memref<1x16xf32, #tpu.memory_space<vmem>>, vector<1x16xf32>
    %4 = vector.broadcast %3 : vector<1x16xf32> to vector<2x16xf32>
    %5 = arith.addf %2, %4 : vector<2x16xf32>
    %c0_5 = arith.constant 0 : index
    %c0_6 = arith.constant 0 : index
    %6 = vector.load %arg4[%c0_5, %c0_6] : memref<512x16xf32, #tpu.memory_space<vmem>>, vector<512x16xf32>
    %cst_7 = arith.constant dense<0.000000e+00> : vector<2x16xf32>
    %7 = tpu.matmul %0, %6, %cst_7 {dimension_numbers = #tpu.dot_dimension_numbers<[1], [0], [0], [1], [0, 0, 1, 1], [], []>} : vector<2x512xf32>, vector<512x16xf32>, vector<2x16xf32> -> vector<2x16xf32>
    %c0_8 = arith.constant 0 : index
    %c0_9 = arith.constant 0 : index
    %8 = vector.load %arg5[%c0_8, %c0_9] : memref<1x16xf32, #tpu.memory_space<vmem>>, vector<1x16xf32>
    %9 = vector.broadcast %8 : vector<1x16xf32> to vector<2x16xf32>
    %10 = arith.addf %7, %9 : vector<2x16xf32>
    %c0_10 = arith.constant 0 : index
    %c0_11 = arith.constant 0 : index
    %11 = vector.load %arg6[%c0_10, %c0_11] : memref<2x16xf32, #tpu.memory_space<vmem>>, vector<2x16xf32>
    tpu.vector_store %arg6[%c0_10, %c0_11], %5 {strides = array<i32>} : memref<2x16xf32, #tpu.memory_space<vmem>>, vector<2x16xf32>,
    %cst_12 = arith.constant 0.000000e+00 : f32
    %12 = vector.broadcast %cst_12 : f32 to vector<2x16xf32>
    %13 = arith.maximumf %10, %12 : vector<2x16xf32>
    %14 = vector.broadcast %cst_12 : f32 to vector<2x16xf32>
    %15 = arith.subf %10, %14 : vector<2x16xf32>
    %16 = arith.cmpf one, %15, %15 : vector<2x16xf32>
    %17 = vector.broadcast %cst_12 : f32 to vector<2x16xf32>
    %18 = arith.addf %10, %17 : vector<2x16xf32>
    %19 = math.absf %15 : vector<2x16xf32>
    %cst_13 = arith.constant 0.000000e+00 : f32
    %20 = vector.broadcast %cst_13 : f32 to vector<2x16xf32>
    %21 = arith.subf %20, %19 : vector<2x16xf32>
    %22 = math.exp %21 : vector<2x16xf32>
    %23 = math.log1p %22 : vector<2x16xf32>
    %24 = arith.addf %13, %23 : vector<2x16xf32>
    %25 = arith.select %16, %18, %24 : vector<2x16xi1>, vector<2x16xf32>
    %c0_14 = arith.constant 0 : index
    %c0_15 = arith.constant 0 : index
    %26 = vector.load %arg7[%c0_14, %c0_15] : memref<2x16xf32, #tpu.memory_space<vmem>>, vector<2x16xf32>
    tpu.vector_store %arg7[%c0_14, %c0_15], %25 {strides = array<i32>} : memref<2x16xf32, #tpu.memory_space<vmem>>, vector<2x16xf32>,
    return
  }
  func.func @transform_0(%arg0: i32) -> (i32, i32) {
    %c0_i32 = arith.constant 0 : i32
    %c0_i32_0 = arith.constant 0 : i32
    %c0_i32_1 = arith.constant 0 : i32
    return %c0_i32, %c0_i32_0 : i32, i32
  }
  func.func @transform_1(%arg0: i32) -> (i32, i32) {
    %c0_i32 = arith.constant 0 : i32
    %c0_i32_0 = arith.constant 0 : i32
    %c0_i32_1 = arith.constant 0 : i32
    return %c0_i32, %c0_i32_0 : i32, i32
  }
  func.func @transform_2(%arg0: i32) -> (i32, i32) {
    %c0_i32 = arith.constant 0 : i32
    %c0_i32_0 = arith.constant 0 : i32
    %c0_i32_1 = arith.constant 0 : i32
    return %c0_i32, %c0_i32_0 : i32, i32
  }
  func.func @transform_3(%arg0: i32) -> (i32, i32) {
    %c0_i32 = arith.constant 0 : i32
    %c0_i32_0 = arith.constant 0 : i32
    %c0_i32_1 = arith.constant 0 : i32
    return %c0_i32, %c0_i32_0 : i32, i32
  }
  func.func @transform_4(%arg0: i32) -> (i32, i32) {
    %c0_i32 = arith.constant 0 : i32
    %c0_i32_0 = arith.constant 0 : i32
    %c0_i32_1 = arith.constant 0 : i32
    return %c0_i32, %c0_i32_0 : i32, i32
  }
  func.func @transform_5(%arg0: i32) -> (i32, i32) {
    %c0_i32 = arith.constant 0 : i32
    %c0_i32_0 = arith.constant 0 : i32
    %c0_i32_1 = arith.constant 0 : i32
    return %c0_i32, %c0_i32_0 : i32, i32
  }
  func.func @transform_6(%arg0: i32) -> (i32, i32) {
    %c0_i32 = arith.constant 0 : i32
    %c0_i32_0 = arith.constant 0 : i32
    %c0_i32_1 = arith.constant 0 : i32
    return %c0_i32, %c0_i32_0 : i32, i32
  }
}

</mosaic_0001>

<llo_original>
// kernel: normal_dist_decoder.1
$region0: #{normal_dist_decoder.1}
  #allocation0 [shape = 'u32[]', space=smem, size = 0x4, offset = 0x4, fixed_abs, tag = 'smem constant byte address 0x4 - core index']
  #allocation1 [shape = 'u32[144,128]{1,0:T(1,128)}', space=vmem, size = 0x12000, scoped, tag = 'internal scratch']
  %s0 = inlined_call_operand.vmem [shape: f32[2,512], index: 0, kind: input, shape index: {}]
  %s1 = inlined_call_operand.vmem [shape: f32[512,16], index: 1, kind: input, shape index: {}]
  %s2 = inlined_call_operand.vmem [shape: f32[1,16], index: 2, kind: input, shape index: {}]
  %s3 = inlined_call_operand.vmem [shape: f32[512,16], index: 3, kind: input, shape index: {}]
  %s4 = inlined_call_operand.vmem [shape: f32[1,16], index: 4, kind: input, shape index: {}]
  %s5 = inlined_call_operand.hbm [shape: f32[2,16], index: 5, kind: output, shape index: {0}]
  %s6 = inlined_call_operand.hbm [shape: f32[2,16], index: 6, kind: output, shape index: {1}]
  %7 = xla_tuple %s5, %s6
  %s8 = sld [smem:[#allocation0]]
  $region38: #{normal_dist_decoder.1} parent=0
    _
  %s10 = ssub.s32 1, %s8
  %s11 = scalar_select 0, %s10, %s8
  $region1: #{normal_dist_decoder.1} parent=0
    #allocation2 [shape = 'u8[1024]{0}', space=vmem, size = 0x400, scoped, tag = 'output window, operand 0, single buffered']
    #allocation3 [shape = 's32[1]{0}', space=sflag, size = 0x4, scoped, tag = 'scoped memory for normal_dist_decoder.1']
    #allocation4 [shape = 'u8[1024]{0}', space=vmem, size = 0x400, scoped, tag = 'output window, operand 1, single buffered']
    #allocation5 [shape = 's32[1]{0}', space=sflag, size = 0x4, scoped, tag = 'scoped memory for normal_dist_decoder.1']
    %12 = vsyncpa [#allocation3], 0
    %13 = vsyncpa [#allocation5], 0
    // Predicated region
    $region2: #{normal_dist_decoder.1} parent=1 // pred_check
      _
    $region3: #{normal_dist_decoder.1} parent=1 // pred_check_branch
      %15 = sbr.rel (0) target = $region5
    $region4: #{normal_dist_decoder.1} parent=1 // pred_region
      _
    $region5: #{normal_dist_decoder.1} parent=1 // pred_fallthru
      _
    // Predicated region
    $region6: #{normal_dist_decoder.1} parent=1 // pred_check
      _
    $region7: #{normal_dist_decoder.1} parent=1 // pred_check_branch
      %17 = sbr.rel (0) target = $region9
    $region8: #{normal_dist_decoder.1} parent=1 // pred_region
      _
    $region9: #{normal_dist_decoder.1} parent=1 // pred_fallthru
      _
    // Predicated region
    $region10: #{normal_dist_decoder.1} parent=1 // pred_check
      _
    $region11: #{normal_dist_decoder.1} parent=1 // pred_check_branch
      %19 = sbr.rel (0) target = $region13
    $region12: #{normal_dist_decoder.1} parent=1 // pred_region
      _
    $region13: #{normal_dist_decoder.1} parent=1 // pred_fallthru
      _
    // Predicated region
    $region14: #{normal_dist_decoder.1} parent=1 // pred_check
      _
    $region15: #{normal_dist_decoder.1} parent=1 // pred_check_branch
      %21 = sbr.rel (0) target = $region17
    $region16: #{normal_dist_decoder.1} parent=1 // pred_region
      _
    $region17: #{normal_dist_decoder.1} parent=1 // pred_fallthru
      _
    // Predicated region
    $region18: #{normal_dist_decoder.1} parent=1 // pred_check
      _
    $region19: #{normal_dist_decoder.1} parent=1 // pred_check_branch
      %23 = sbr.rel (0) target = $region21
    $region20: #{normal_dist_decoder.1} parent=1 // pred_region
      _
    $region21: #{normal_dist_decoder.1} parent=1 // pred_fallthru
      _
    %v24 = vld [vmem:[%s0] sm:$0xff]
    %v25 = vld [vmem:[%s1] sm:$0xff]
    %v26 = vld [vmem:[%s1 + $0x8] sm:$0xff]
    %v27 = vld [vmem:[%s1 + $0x10] sm:$0xff]
    %v28 = vld [vmem:[%s1 + $0x18] sm:$0xff]
    %v29 = vld [vmem:[%s1 + $0x20] sm:$0xff]
    %v30 = vld [vmem:[%s1 + $0x28] sm:$0xff]
    %v31 = vld [vmem:[%s1 + $0x30] sm:$0xff]
    %v32 = vld [vmem:[%s1 + $0x38] sm:$0xff]
    %v33 = vld [vmem:[%s1 + $0x40] sm:$0xff]
    %v34 = vld [vmem:[%s1 + $0x48] sm:$0xff]
    %v35 = vld [vmem:[%s1 + $0x50] sm:$0xff]
    %v36 = vld [vmem:[%s1 + $0x58] sm:$0xff]
    %v37 = vld [vmem:[%s1 + $0x60] sm:$0xff]
    %v38 = vld [vmem:[%s1 + $0x68] sm:$0xff]
    %v39 = vld [vmem:[%s1 + $0x70] sm:$0xff]
    %v40 = vld [vmem:[%s1 + $0x78] sm:$0xff]
    %v41 = vld [vmem:[%s1 + $0x80] sm:$0xff]
    %v42 = vld [vmem:[%s1 + $0x88] sm:$0xff]
    %v43 = vld [vmem:[%s1 + $0x90] sm:$0xff]
    %v44 = vld [vmem:[%s1 + $0x98] sm:$0xff]
    %v45 = vld [vmem:[%s1 + $0xa0] sm:$0xff]
    %v46 = vld [vmem:[%s1 + $0xa8] sm:$0xff]
    %v47 = vld [vmem:[%s1 + $0xb0] sm:$0xff]
    %v48 = vld [vmem:[%s1 + $0xb8] sm:$0xff]
    %v49 = vld [vmem:[%s1 + $0xc0] sm:$0xff]
    %v50 = vld [vmem:[%s1 + $0xc8] sm:$0xff]
    %v51 = vld [vmem:[%s1 + $0xd0] sm:$0xff]
    %v52 = vld [vmem:[%s1 + $0xd8] sm:$0xff]
    %v53 = vld [vmem:[%s1 + $0xe0] sm:$0xff]
    %v54 = vld [vmem:[%s1 + $0xe8] sm:$0xff]
    %v55 = vld [vmem:[%s1 + $0xf0] sm:$0xff]
    %v56 = vld [vmem:[%s1 + $0xf8] sm:$0xff]
    %v57 = vld [vmem:[%s1 + $0x100] sm:$0xff]
    %v58 = vld [vmem:[%s1 + $0x108] sm:$0xff]
    %v59 = vld [vmem:[%s1 + $0x110] sm:$0xff]
    %v60 = vld [vmem:[%s1 + $0x118] sm:$0xff]
    %v61 = vld [vmem:[%s1 + $0x120] sm:$0xff]
    %v62 = vld [vmem:[%s1 + $0x128] sm:$0xff]
    %v63 = vld [vmem:[%s1 + $0x130] sm:$0xff]
    %v64 = vld [vmem:[%s1 + $0x138] sm:$0xff]
    %v65 = vld [vmem:[%s1 + $0x140] sm:$0xff]
    %v66 = vld [vmem:[%s1 + $0x148] sm:$0xff]
    %v67 = vld [vmem:[%s1 + $0x150] sm:$0xff]
    %v68 = vld [vmem:[%s1 + $0x158] sm:$0xff]
    %v69 = vld [vmem:[%s1 + $0x160] sm:$0xff]
    %v70 = vld [vmem:[%s1 + $0x168] sm:$0xff]
    %v71 = vld [vmem:[%s1 + $0x170] sm:$0xff]
    %v72 = vld [vmem:[%s1 + $0x178] sm:$0xff]
    %v73 = vld [vmem:[%s1 + $0x180] sm:$0xff]
    %v74 = vld [vmem:[%s1 + $0x188] sm:$0xff]
    %v75 = vld [vmem:[%s1 + $0x190] sm:$0xff]
    %v76 = vld [vmem:[%s1 + $0x198] sm:$0xff]
    %v77 = vld [vmem:[%s1 + $0x1a0] sm:$0xff]
    %v78 = vld [vmem:[%s1 + $0x1a8] sm:$0xff]
    %v79 = vld [vmem:[%s1 + $0x1b0] sm:$0xff]
    %v80 = vld [vmem:[%s1 + $0x1b8] sm:$0xff]
    %v81 = vld [vmem:[%s1 + $0x1c0] sm:$0xff]
    %v82 = vld [vmem:[%s1 + $0x1c8] sm:$0xff]
    %v83 = vld [vmem:[%s1 + $0x1d0] sm:$0xff]
    %v84 = vld [vmem:[%s1 + $0x1d8] sm:$0xff]
    %v85 = vld [vmem:[%s1 + $0x1e0] sm:$0xff]
    %v86 = vld [vmem:[%s1 + $0x1e8] sm:$0xff]
    %v87 = vld [vmem:[%s1 + $0x1f0] sm:$0xff]
    %v88 = vld [vmem:[%s1 + $0x1f8] sm:$0xff]
    %v89 = vld [vmem:[%s2] sm:$0x1]
    %v91 = vlaneseq
    %v92 = vshrl.u32 %v91, 7
    %v93 = vsub.s32 0, %v92
    %v94 = vrot.slane %v89, %v93
    %v97 = vcombine.high %v24, %v24
    %v99 = vunpack.c.l.s4 1983009808
    %v100 = vunpack.c.0.s8 %v99
    %v101 = vlaneseq
    %v102 = vshrl.u32 %v101, 7
    %v103 = vsub.s32 %v100, %v102
    %v104 = vrot.slane %v24, %v103
    %v106 = vunpack.c.l.s4 1983009808
    %v107 = vunpack.c.0.s8 %v106
    %v108 = vlaneseq
    %v109 = vshrl.u32 %v108, 7
    %v110 = vsub.s32 %v107, %v109
    %v111 = vrot.slane %v97, %v110
    %v112 = vcombine.high %v104, %v104
    %v113 = vcombine.high %v111, %v111
    %118 = vmatprep.subr.mxu0 0.0
    %119 = vmatpush1.msra.mxu0 %v25
    %120 = vmatprep.subr.mxu0 0.0
    %121 = vmatpush1.msra.mxu0 %v26
    %122 = vmatprep.subr.mxu0 0.0
    %123 = vmatpush1.msra.mxu0 %v27
    %124 = vmatprep.subr.mxu0 0.0
    %125 = vmatpush1.msra.mxu0 %v28
    %126 = vmatprep.subr.mxu0 0.0
    %127 = vmatpush1.msra.mxu0 %v29
    %128 = vmatprep.subr.mxu0 0.0
    %129 = vmatpush1.msra.mxu0 %v30
    %130 = vmatprep.subr.mxu0 0.0
    %131 = vmatpush1.msra.mxu0 %v31
    %132 = vmatprep.subr.mxu0 0.0
    %133 = vmatpush1.msra.mxu0 %v32
    %134 = vmatprep.subr.mxu0 0.0
    %135 = vmatpush1.msra.mxu0 %v33
    %136 = vmatprep.subr.mxu0 0.0
    %137 = vmatpush1.msra.mxu0 %v34
    %138 = vmatprep.subr.mxu0 0.0
    %139 = vmatpush1.msra.mxu0 %v35
    %140 = vmatprep.subr.mxu0 0.0
    %141 = vmatpush1.msra.mxu0 %v36
    %142 = vmatprep.subr.mxu0 0.0
    %143 = vmatpush1.msra.mxu0 %v37
    %144 = vmatprep.subr.mxu0 0.0
    %145 = vmatpush1.msra.mxu0 %v38
    %146 = vmatprep.subr.mxu0 0.0
    %147 = vmatpush1.msra.mxu0 %v39
    %148 = vmatprep.subr.mxu0 0.0
    %149 = vmatpush1.msra.mxu0 %v40
    %150 = vmatprep.subr.mxu0 0.0
    %151 = vmatpush1.msra.mxu0 %v41
    %152 = vmatprep.subr.mxu0 0.0
    %153 = vmatpush1.msra.mxu0 %v42
    %154 = vmatprep.subr.mxu0 0.0
    %155 = vmatpush1.msra.mxu0 %v43
    %156 = vmatprep.subr.mxu0 0.0
    %157 = vmatpush1.msra.mxu0 %v44
    %158 = vmatprep.subr.mxu0 0.0
    %159 = vmatpush1.msra.mxu0 %v45
    %160 = vmatprep.subr.mxu0 0.0
    %161 = vmatpush1.msra.mxu0 %v46
    %162 = vmatprep.subr.mxu0 0.0
    %163 = vmatpush1.msra.mxu0 %v47
    %164 = vmatprep.subr.mxu0 0.0
    %165 = vmatpush1.msra.mxu0 %v48
    %166 = vmatprep.subr.mxu0 0.0
    %167 = vmatpush1.msra.mxu0 %v49
    %168 = vmatprep.subr.mxu0 0.0
    %169 = vmatpush1.msra.mxu0 %v50
    %170 = vmatprep.subr.mxu0 0.0
    %171 = vmatpush1.msra.mxu0 %v51
    %172 = vmatprep.subr.mxu0 0.0
    %173 = vmatpush1.msra.mxu0 %v52
    %174 = vmatprep.subr.mxu0 0.0
    %175 = vmatpush1.msra.mxu0 %v53
    %176 = vmatprep.subr.mxu0 0.0
    %177 = vmatpush1.msra.mxu0 %v54
    %178 = vmatprep.subr.mxu0 0.0
    %179 = vmatpush1.msra.mxu0 %v55
    %180 = vmatprep.subr.mxu0 0.0
    %181 = vmatpush1.msra.mxu0 %v56
    %182 = vmatprep.mubr.f32.mxu0 %v112
    %183 = vmatmul.mubr.f32.gmra.mrb[0].mxu0 %v104
    %v184 = vpop.f32.mrb[0].mxu0
    %v185 = vadd.f32 %v94, %v184
    %v186 = vpop.f32.mrb[0].mxu0
    %187 = vdwg.mxu0
    %188 = vmatprep.subr.mxu0 0.0
    %189 = vmatpush1.msra.mxu0 %v57
    %190 = vmatprep.subr.mxu0 0.0
    %191 = vmatpush1.msra.mxu0 %v58
    %192 = vmatprep.subr.mxu0 0.0
    %193 = vmatpush1.msra.mxu0 %v59
    %194 = vmatprep.subr.mxu0 0.0
    %195 = vmatpush1.msra.mxu0 %v60
    %196 = vmatprep.subr.mxu0 0.0
    %197 = vmatpush1.msra.mxu0 %v61
    %198 = vmatprep.subr.mxu0 0.0
    %199 = vmatpush1.msra.mxu0 %v62
    %200 = vmatprep.subr.mxu0 0.0
    %201 = vmatpush1.msra.mxu0 %v63
    %202 = vmatprep.subr.mxu0 0.0
    %203 = vmatpush1.msra.mxu0 %v64
    %204 = vmatprep.subr.mxu0 0.0
    %205 = vmatpush1.msra.mxu0 %v65
    %206 = vmatprep.subr.mxu0 0.0
    %207 = vmatpush1.msra.mxu0 %v66
    %208 = vmatprep.subr.mxu0 0.0
    %209 = vmatpush1.msra.mxu0 %v67
    %210 = vmatprep.subr.mxu0 0.0
    %211 = vmatpush1.msra.mxu0 %v68
    %212 = vmatprep.subr.mxu0 0.0
    %213 = vmatpush1.msra.mxu0 %v69
    %214 = vmatprep.subr.mxu0 0.0
    %215 = vmatpush1.msra.mxu0 %v70
    %216 = vmatprep.subr.mxu0 0.0
    %217 = vmatpush1.msra.mxu0 %v71
    %218 = vmatprep.subr.mxu0 0.0
    %219 = vmatpush1.msra.mxu0 %v72
    %220 = vmatprep.subr.mxu0 0.0
    %221 = vmatpush1.msra.mxu0 %v73
    %222 = vmatprep.subr.mxu0 0.0
    %223 = vmatpush1.msra.mxu0 %v74
    %224 = vmatprep.subr.mxu0 0.0
    %225 = vmatpush1.msra.mxu0 %v75
    %226 = vmatprep.subr.mxu0 0.0
    %227 = vmatpush1.msra.mxu0 %v76
    %228 = vmatprep.subr.mxu0 0.0
    %229 = vmatpush1.msra.mxu0 %v77
    %230 = vmatprep.subr.mxu0 0.0
    %231 = vmatpush1.msra.mxu0 %v78
    %232 = vmatprep.subr.mxu0 0.0
    %233 = vmatpush1.msra.mxu0 %v79
    %234 = vmatprep.subr.mxu0 0.0
    %235 = vmatpush1.msra.mxu0 %v80
    %236 = vmatprep.subr.mxu0 0.0
    %237 = vmatpush1.msra.mxu0 %v81
    %238 = vmatprep.subr.mxu0 0.0
    %239 = vmatpush1.msra.mxu0 %v82
    %240 = vmatprep.subr.mxu0 0.0
    %241 = vmatpush1.msra.mxu0 %v83
    %242 = vmatprep.subr.mxu0 0.0
    %243 = vmatpush1.msra.mxu0 %v84
    %244 = vmatprep.subr.mxu0 0.0
    %245 = vmatpush1.msra.mxu0 %v85
    %246 = vmatprep.subr.mxu0 0.0
    %247 = vmatpush1.msra.mxu0 %v86
    %248 = vmatprep.subr.mxu0 0.0
    %249 = vmatpush1.msra.mxu0 %v87
    %250 = vmatprep.subr.mxu0 0.0
    %251 = vmatpush1.msra.mxu0 %v88
    %252 = vmatprep.mubr.f32.mxu0 %v113
    %253 = vmatmul.mubr.f32.gmra.mrb[0].mxu0 %v111
    %v254 = vpop.f32.mrb[0].mxu0
    %v255 = vadd.f32 %v185, %v254
    %v256 = vpop.f32.mrb[0].mxu0
    %257 = vdwg.mxu0
    %v258 = vld [vmem:[%s3] sm:$0xff]
    %v259 = vld [vmem:[%s3 + $0x8] sm:$0xff]
    %v260 = vld [vmem:[%s3 + $0x10] sm:$0xff]
    %v261 = vld [vmem:[%s3 + $0x18] sm:$0xff]
    %v262 = vld [vmem:[%s3 + $0x20] sm:$0xff]
    %v263 = vld [vmem:[%s3 + $0x28] sm:$0xff]
    %v264 = vld [vmem:[%s3 + $0x30] sm:$0xff]
    %v265 = vld [vmem:[%s3 + $0x38] sm:$0xff]
    %v266 = vld [vmem:[%s3 + $0x40] sm:$0xff]
    %v267 = vld [vmem:[%s3 + $0x48] sm:$0xff]
    %v268 = vld [vmem:[%s3 + $0x50] sm:$0xff]
    %v269 = vld [vmem:[%s3 + $0x58] sm:$0xff]
    %v270 = vld [vmem:[%s3 + $0x60] sm:$0xff]
    %v271 = vld [vmem:[%s3 + $0x68] sm:$0xff]
    %v272 = vld [vmem:[%s3 + $0x70] sm:$0xff]
    %v273 = vld [vmem:[%s3 + $0x78] sm:$0xff]
    %v274 = vld [vmem:[%s3 + $0x80] sm:$0xff]
    %v275 = vld [vmem:[%s3 + $0x88] sm:$0xff]
    %v276 = vld [vmem:[%s3 + $0x90] sm:$0xff]
    %v277 = vld [vmem:[%s3 + $0x98] sm:$0xff]
    %v278 = vld [vmem:[%s3 + $0xa0] sm:$0xff]
    %v279 = vld [vmem:[%s3 + $0xa8] sm:$0xff]
    %v280 = vld [vmem:[%s3 + $0xb0] sm:$0xff]
    %v281 = vld [vmem:[%s3 + $0xb8] sm:$0xff]
    %v282 = vld [vmem:[%s3 + $0xc0] sm:$0xff]
    %v283 = vld [vmem:[%s3 + $0xc8] sm:$0xff]
    %v284 = vld [vmem:[%s3 + $0xd0] sm:$0xff]
    %v285 = vld [vmem:[%s3 + $0xd8] sm:$0xff]
    %v286 = vld [vmem:[%s3 + $0xe0] sm:$0xff]
    %v287 = vld [vmem:[%s3 + $0xe8] sm:$0xff]
    %v288 = vld [vmem:[%s3 + $0xf0] sm:$0xff]
    %v289 = vld [vmem:[%s3 + $0xf8] sm:$0xff]
    %v290 = vld [vmem:[%s3 + $0x100] sm:$0xff]
    %v291 = vld [vmem:[%s3 + $0x108] sm:$0xff]
    %v292 = vld [vmem:[%s3 + $0x110] sm:$0xff]
    %v293 = vld [vmem:[%s3 + $0x118] sm:$0xff]
    %v294 = vld [vmem:[%s3 + $0x120] sm:$0xff]
    %v295 = vld [vmem:[%s3 + $0x128] sm:$0xff]
    %v296 = vld [vmem:[%s3 + $0x130] sm:$0xff]
    %v297 = vld [vmem:[%s3 + $0x138] sm:$0xff]
    %v298 = vld [vmem:[%s3 + $0x140] sm:$0xff]
    %v299 = vld [vmem:[%s3 + $0x148] sm:$0xff]
    %v300 = vld [vmem:[%s3 + $0x150] sm:$0xff]
    %v301 = vld [vmem:[%s3 + $0x158] sm:$0xff]
    %v302 = vld [vmem:[%s3 + $0x160] sm:$0xff]
    %v303 = vld [vmem:[%s3 + $0x168] sm:$0xff]
    %v304 = vld [vmem:[%s3 + $0x170] sm:$0xff]
    %v305 = vld [vmem:[%s3 + $0x178] sm:$0xff]
    %v306 = vld [vmem:[%s3 + $0x180] sm:$0xff]
    %v307 = vld [vmem:[%s3 + $0x188] sm:$0xff]
    %v308 = vld [vmem:[%s3 + $0x190] sm:$0xff]
    %v309 = vld [vmem:[%s3 + $0x198] sm:$0xff]
    %v310 = vld [vmem:[%s3 + $0x1a0] sm:$0xff]
    %v311 = vld [vmem:[%s3 + $0x1a8] sm:$0xff]
    %v312 = vld [vmem:[%s3 + $0x1b0] sm:$0xff]
    %v313 = vld [vmem:[%s3 + $0x1b8] sm:$0xff]
    %v314 = vld [vmem:[%s3 + $0x1c0] sm:$0xff]
    %v315 = vld [vmem:[%s3 + $0x1c8] sm:$0xff]
    %v316 = vld [vmem:[%s3 + $0x1d0] sm:$0xff]
    %v317 = vld [vmem:[%s3 + $0x1d8] sm:$0xff]
    %v318 = vld [vmem:[%s3 + $0x1e0] sm:$0xff]
    %v319 = vld [vmem:[%s3 + $0x1e8] sm:$0xff]
    %v320 = vld [vmem:[%s3 + $0x1f0] sm:$0xff]
    %v321 = vld [vmem:[%s3 + $0x1f8] sm:$0xff]
    %v322 = vld [vmem:[%s4] sm:$0x1]
    %v324 = vlaneseq
    %v325 = vshrl.u32 %v324, 7
    %v326 = vsub.s32 0, %v325
    %v327 = vrot.slane %v322, %v326
    %329 = vmatprep.subr.mxu0 0.0
    %330 = vmatpush1.msra.mxu0 %v258
    %331 = vmatprep.subr.mxu0 0.0
    %332 = vmatpush1.msra.mxu0 %v259
    %333 = vmatprep.subr.mxu0 0.0
    %334 = vmatpush1.msra.mxu0 %v260
    %335 = vmatprep.subr.mxu0 0.0
    %336 = vmatpush1.msra.mxu0 %v261
    %337 = vmatprep.subr.mxu0 0.0
    %338 = vmatpush1.msra.mxu0 %v262
    %339 = vmatprep.subr.mxu0 0.0
    %340 = vmatpush1.msra.mxu0 %v263
    %341 = vmatprep.subr.mxu0 0.0
    %342 = vmatpush1.msra.mxu0 %v264
    %343 = vmatprep.subr.mxu0 0.0
    %344 = vmatpush1.msra.mxu0 %v265
    %345 = vmatprep.subr.mxu0 0.0
    %346 = vmatpush1.msra.mxu0 %v266
    %347 = vmatprep.subr.mxu0 0.0
    %348 = vmatpush1.msra.mxu0 %v267
    %349 = vmatprep.subr.mxu0 0.0
    %350 = vmatpush1.msra.mxu0 %v268
    %351 = vmatprep.subr.mxu0 0.0
    %352 = vmatpush1.msra.mxu0 %v269
    %353 = vmatprep.subr.mxu0 0.0
    %354 = vmatpush1.msra.mxu0 %v270
    %355 = vmatprep.subr.mxu0 0.0
    %356 = vmatpush1.msra.mxu0 %v271
    %357 = vmatprep.subr.mxu0 0.0
    %358 = vmatpush1.msra.mxu0 %v272
    %359 = vmatprep.subr.mxu0 0.0
    %360 = vmatpush1.msra.mxu0 %v273
    %361 = vmatprep.subr.mxu0 0.0
    %362 = vmatpush1.msra.mxu0 %v274
    %363 = vmatprep.subr.mxu0 0.0
    %364 = vmatpush1.msra.mxu0 %v275
    %365 = vmatprep.subr.mxu0 0.0
    %366 = vmatpush1.msra.mxu0 %v276
    %367 = vmatprep.subr.mxu0 0.0
    %368 = vmatpush1.msra.mxu0 %v277
    %369 = vmatprep.subr.mxu0 0.0
    %370 = vmatpush1.msra.mxu0 %v278
    %371 = vmatprep.subr.mxu0 0.0
    %372 = vmatpush1.msra.mxu0 %v279
    %373 = vmatprep.subr.mxu0 0.0
    %374 = vmatpush1.msra.mxu0 %v280
    %375 = vmatprep.subr.mxu0 0.0
    %376 = vmatpush1.msra.mxu0 %v281
    %377 = vmatprep.subr.mxu0 0.0
    %378 = vmatpush1.msra.mxu0 %v282
    %379 = vmatprep.subr.mxu0 0.0
    %380 = vmatpush1.msra.mxu0 %v283
    %381 = vmatprep.subr.mxu0 0.0
    %382 = vmatpush1.msra.mxu0 %v284
    %383 = vmatprep.subr.mxu0 0.0
    %384 = vmatpush1.msra.mxu0 %v285
    %385 = vmatprep.subr.mxu0 0.0
    %386 = vmatpush1.msra.mxu0 %v286
    %387 = vmatprep.subr.mxu0 0.0
    %388 = vmatpush1.msra.mxu0 %v287
    %389 = vmatprep.subr.mxu0 0.0
    %390 = vmatpush1.msra.mxu0 %v288
    %391 = vmatprep.subr.mxu0 0.0
    %392 = vmatpush1.msra.mxu0 %v289
    %393 = vmatprep.mubr.f32.mxu0 %v112
    %394 = vmatmul.mubr.f32.gmra.mrb[0].mxu0 %v104
    %v395 = vpop.f32.mrb[0].mxu0
    %v396 = vadd.f32 %v327, %v395
    %v397 = vpop.f32.mrb[0].mxu0
    %398 = vdwg.mxu0
    %399 = vmatprep.subr.mxu0 0.0
    %400 = vmatpush1.msra.mxu0 %v290
    %401 = vmatprep.subr.mxu0 0.0
    %402 = vmatpush1.msra.mxu0 %v291
    %403 = vmatprep.subr.mxu0 0.0
    %404 = vmatpush1.msra.mxu0 %v292
    %405 = vmatprep.subr.mxu0 0.0
    %406 = vmatpush1.msra.mxu0 %v293
    %407 = vmatprep.subr.mxu0 0.0
    %408 = vmatpush1.msra.mxu0 %v294
    %409 = vmatprep.subr.mxu0 0.0
    %410 = vmatpush1.msra.mxu0 %v295
    %411 = vmatprep.subr.mxu0 0.0
    %412 = vmatpush1.msra.mxu0 %v296
    %413 = vmatprep.subr.mxu0 0.0
    %414 = vmatpush1.msra.mxu0 %v297
    %415 = vmatprep.subr.mxu0 0.0
    %416 = vmatpush1.msra.mxu0 %v298
    %417 = vmatprep.subr.mxu0 0.0
    %418 = vmatpush1.msra.mxu0 %v299
    %419 = vmatprep.subr.mxu0 0.0
    %420 = vmatpush1.msra.mxu0 %v300
    %421 = vmatprep.subr.mxu0 0.0
    %422 = vmatpush1.msra.mxu0 %v301
    %423 = vmatprep.subr.mxu0 0.0
    %424 = vmatpush1.msra.mxu0 %v302
    %425 = vmatprep.subr.mxu0 0.0
    %426 = vmatpush1.msra.mxu0 %v303
    %427 = vmatprep.subr.mxu0 0.0
    %428 = vmatpush1.msra.mxu0 %v304
    %429 = vmatprep.subr.mxu0 0.0
    %430 = vmatpush1.msra.mxu0 %v305
    %431 = vmatprep.subr.mxu0 0.0
    %432 = vmatpush1.msra.mxu0 %v306
    %433 = vmatprep.subr.mxu0 0.0
    %434 = vmatpush1.msra.mxu0 %v307
    %435 = vmatprep.subr.mxu0 0.0
    %436 = vmatpush1.msra.mxu0 %v308
    %437 = vmatprep.subr.mxu0 0.0
    %438 = vmatpush1.msra.mxu0 %v309
    %439 = vmatprep.subr.mxu0 0.0
    %440 = vmatpush1.msra.mxu0 %v310
    %441 = vmatprep.subr.mxu0 0.0
    %442 = vmatpush1.msra.mxu0 %v311
    %443 = vmatprep.subr.mxu0 0.0
    %444 = vmatpush1.msra.mxu0 %v312
    %445 = vmatprep.subr.mxu0 0.0
    %446 = vmatpush1.msra.mxu0 %v313
    %447 = vmatprep.subr.mxu0 0.0
    %448 = vmatpush1.msra.mxu0 %v314
    %449 = vmatprep.subr.mxu0 0.0
    %450 = vmatpush1.msra.mxu0 %v315
    %451 = vmatprep.subr.mxu0 0.0
    %452 = vmatpush1.msra.mxu0 %v316
    %453 = vmatprep.subr.mxu0 0.0
    %454 = vmatpush1.msra.mxu0 %v317
    %455 = vmatprep.subr.mxu0 0.0
    %456 = vmatpush1.msra.mxu0 %v318
    %457 = vmatprep.subr.mxu0 0.0
    %458 = vmatpush1.msra.mxu0 %v319
    %459 = vmatprep.subr.mxu0 0.0
    %460 = vmatpush1.msra.mxu0 %v320
    %461 = vmatprep.subr.mxu0 0.0
    %462 = vmatpush1.msra.mxu0 %v321
    %463 = vmatprep.mubr.f32.mxu0 %v113
    %464 = vmatmul.mubr.f32.gmra.mrb[0].mxu0 %v111
    %v465 = vpop.f32.mrb[0].mxu0
    %v466 = vadd.f32 %v396, %v465
    %v467 = vpop.f32.mrb[0].mxu0
    %468 = vdwg.mxu0
    %vm469 = vcmask 123904
    %470 = vst.msk [vmem:[#allocation2] sm:$0x3] %vm469, %v255
    %v471 = vmax.f32 %v466, 0.0
    %vm472 = vcmp.ne.f32.partialorder %v466, %v466
    %v473 = vadd.f32 %v466, 0.0
    %v474 = vand.u32 2147483647, %v466
    %v475 = vsub.f32 0.0, %v474
    %v476 = vmul.f32 %v475, 1.442695
    %v477 = vpow.pop %v476
    %v478 = vadd.f32 %v477, 1.0
    %v479 = vlog2.pop %v478
    %v480 = vmul.f32 %v479, 0.6931472
    %v481 = vmul.f32 -0.5, %v477
    %v482 = vadd.f32 %v481, 1.0
    %v483 = vmul.f32 %v482, %v477
    %v484 = vand.u32 2147483647, %v477
    %vm485 = vcmp.lt.f32.partialorder %v484, 0.0004427343
    %v486 = vsel %vm485, %v483, %v480
    %v487 = vadd.f32 %v471, %v486
    %v488 = vsel %vm472, %v473, %v487
    %489 = vst.msk [vmem:[#allocation4] sm:$0x3] %vm469, %v488
    // Predicated region
    $region22: #{normal_dist_decoder.1} parent=1 // pred_check
      _
    $region23: #{normal_dist_decoder.1} parent=1 // pred_check_branch
      %491 = sbr.rel (0) target = $region25
    $region24: #{normal_dist_decoder.1} parent=1 // pred_region
      %s493 = ssub.s32 32, 32
      %494 = vsyncadd [#allocation3], %s493
      %s496 = sshll.u32 [#allocation2], 4
      %s497 = int_to_ptr.vmem [resolvable:$true] %s496
      %499 = dma.vmem_to_hbm [thread:$0]  %s497, 32, %s5, [#allocation3]
    $region25: #{normal_dist_decoder.1} parent=1 // pred_fallthru
      _
    // Predicated region
    $region26: #{normal_dist_decoder.1} parent=1 // pred_check
      _
    $region27: #{normal_dist_decoder.1} parent=1 // pred_check_branch
      %501 = sbr.rel (0) target = $region29
    $region28: #{normal_dist_decoder.1} parent=1 // pred_region
      %s503 = ssub.s32 32, 32
      %504 = vsyncadd [#allocation5], %s503
      %s506 = sshll.u32 [#allocation4], 4
      %s507 = int_to_ptr.vmem [resolvable:$true] %s506
      %509 = dma.vmem_to_hbm [thread:$0]  %s507, 32, %s6, [#allocation5]
    $region29: #{normal_dist_decoder.1} parent=1 // pred_fallthru
      _
    // Predicated region
    $region30: #{normal_dist_decoder.1} parent=1 // pred_check
      _
    $region31: #{normal_dist_decoder.1} parent=1 // pred_check_branch
      %511 = sbr.rel (0) target = $region33
    $region32: #{normal_dist_decoder.1} parent=1 // pred_region
      %512 = dma.done [#allocation3], 32
    $region33: #{normal_dist_decoder.1} parent=1 // pred_fallthru
      _
    // Predicated region
    $region34: #{normal_dist_decoder.1} parent=1 // pred_check
      _
    $region35: #{normal_dist_decoder.1} parent=1 // pred_check_branch
      %514 = sbr.rel (0) target = $region37
    $region36: #{normal_dist_decoder.1} parent=1 // pred_region
      %515 = dma.done [#allocation5], 32
    $region37: #{normal_dist_decoder.1} parent=1 // pred_fallthru
      _
    %516 = vsyncpa [#allocation3], 1
    %517 = vsyncpa [#allocation5], 1

</llo_original>
